<compile_context>
chip_gen: v5e
topology: v5e:2x2
jax: 0.10.0
libtpu: 0.0.40
codegen_flags: <defaults>
</compile_context>

<pallas_src>
import jax
import jax.numpy as jnp
from jax.experimental import pallas as pl
from jax.experimental.pallas import tpu as pltpu


def moe_kernel(tile_expert_ref, tile_valid_ref, x_ref, w_ref, b_ref, o_ref):
    # tile_expert_ref : SMEM (num_tiles,) int32 -- expert id of each token tile
    # tile_valid_ref  : SMEM (num_tiles,) int32 -- 1 iff the tile holds real tokens
    # x_ref : (tm, D_in)   sorted/padded token tile
    # w_ref : (D_in, tn)   this tile's expert weight column-block (lead dim squeezed)
    # b_ref : (1, tn)      this tile's expert bias column-block   (lead dim squeezed)
    # o_ref : (tm, tn)     lane-dense output tile
    t = pl.program_id(1)

    @pl.when(tile_valid_ref[t] != 0)
    def _():
        y = jnp.dot(x_ref[...], w_ref[...], preferred_element_type=jnp.float32)
        y = y + b_ref[...].astype(jnp.float32)       # (1, tn) broadcast over rows
        o_ref[...] = y.astype(o_ref.dtype)


def make_moe_forward(x, module_indices, w_stack, b_stack, *, tm=128, tn=None,
                     compute_dtype=None, weight_buffers=2):
    """x: [B, D_in], module_indices: [B] int32,
       w_stack: [budget, D_in, D_out], b_stack: [budget, D_out].

       tm: token-tile rows (128 for v5e, 256 worth trying on v6e/v7x).
       tn: output-column tile (auto: 256 if divisible, else 128, else D_out).
       compute_dtype: matmul operand dtype; defaults to w_stack.dtype so
         pre-storing experts in bf16 avoids a per-call weight cast/copy.
       weight_buffers: >2 enables deeper weight-prefetch (pl.Buffered)."""
    B, D_in = x.shape
    budget, _, D_out = w_stack.shape

    if compute_dtype is None:
        compute_dtype = w_stack.dtype
    cdt = jnp.dtype(compute_dtype)
    min_rows = {4: 8, 2: 16, 1: 32}.get(cdt.itemsize, 8)
    assert tm % min_rows == 0, f"tm={tm} must be a multiple of {min_rows} for {cdt}"

    if tn is None:
        tn = 256 if D_out % 256 == 0 else (128 if D_out % 128 == 0 else D_out)
    assert D_out % tn == 0, f"tn={tn} must divide D_out={D_out}"
    num_n = D_out // tn

    # ---- routing: clamp ids, sort tokens by expert, pad groups to multiples of tm ----
    idx = jnp.clip(module_indices.astype(jnp.int32), 0, budget - 1)
    perm = jnp.argsort(idx)                                  # sorted pos -> token id
    sorted_e = idx[perm]
    counts = jnp.bincount(idx, length=budget).astype(jnp.int32)
    padded_counts = ((counts + tm - 1) // tm) * tm
    pad_ends = jnp.cumsum(padded_counts).astype(jnp.int32)
    pad_starts = pad_ends - padded_counts
    raw_starts = jnp.cumsum(counts).astype(jnp.int32) - counts
    rank = jnp.arange(B, dtype=jnp.int32) - raw_starts[sorted_e]
    dest = pad_starts[sorted_e] + rank                       # padded slot per sorted pos

    num_tiles = -(-B // tm) + budget                         # static upper bound
    P = num_tiles * tm                                       # padded token count

    # Source token for every padded slot (padding slots duplicate token 0; their
    # outputs are never gathered back).
    src = jnp.zeros((P,), jnp.int32).at[dest].set(perm.astype(jnp.int32))
    x_sorted = x[src].astype(compute_dtype)                  # (P, D_in)

    # Expert owning each token tile + validity flag (fully-padding tiles skipped).
    tile_starts = jnp.arange(num_tiles, dtype=jnp.int32) * tm
    tile_expert = jnp.minimum(
        jnp.searchsorted(pad_ends, tile_starts, side="right"), budget - 1
    ).astype(jnp.int32)
    tile_valid = (tile_starts < pad_ends[budget - 1]).astype(jnp.int32)

    # Weights: use as stored when dtype already matches (pre-store in bf16 on
    # v6e/v7x to avoid this full-copy cast every call).
    w = w_stack if w_stack.dtype == cdt else w_stack.astype(cdt)
    b3 = b_stack.reshape(budget, 1, D_out)                   # bias stays f32

    # Explicit VMEM budget from the tile footprint (double-buffered), <=64 MiB (v7x).
    out_dtype = x.dtype
    est = 2 * (tm * D_in * cdt.itemsize
               + D_in * tn * cdt.itemsize
               + tn * jnp.dtype(b3.dtype).itemsize
               + tm * tn * jnp.dtype(out_dtype).itemsize)
    vmem_limit = int(min(64 * 2**20, max(32 * 2**20, 3 * est)))

    w_spec_kwargs = {}
    if weight_buffers is not None and weight_buffers > 2:
        # Deeper weight lookahead across expert switches (short groups).
        w_spec_kwargs["pipeline_mode"] = pl.Buffered(weight_buffers)
    w_spec = pl.BlockSpec((pl.Squeezed(), D_in, tn),
                          lambda n, t, te, tv: (te[t], 0, n), **w_spec_kwargs)

    out_padded = pl.pallas_call(
        moe_kernel,
        out_shape=jax.ShapeDtypeStruct((P, D_out), out_dtype),
        grid_spec=pltpu.PrefetchScalarGridSpec(
            num_scalar_prefetch=2,
            # N axis OUTER so the weight block index repeats across consecutive
            # token tiles of a group (no weight re-DMA inside a group).
            grid=(num_n, num_tiles),
            in_specs=[
                # token tile: resident per t; re-read once per N pass
                pl.BlockSpec((tm, D_in), lambda n, t, te, tv: (t, 0)),
                # expert weight column block: (D_in, tn)
                w_spec,
                # expert bias column block: (1, tn)
                pl.BlockSpec((pl.Squeezed(), 1, tn),
                             lambda n, t, te, tv: (te[t], 0, n)),
            ],
            out_specs=pl.BlockSpec((tm, tn), lambda n, t, te, tv: (t, n)),
        ),
        compiler_params=pltpu.CompilerParams(
            dimension_semantics=("parallel", "parallel"),
            vmem_limit_bytes=vmem_limit),
    )(tile_expert, tile_valid, x_sorted, w, b3)

    # Un-sort back to original token order (preserves torch.cat order).
    token_slot = jnp.zeros((B,), jnp.int32).at[perm].set(dest)
    return out_padded[token_slot]


if __name__ == "__main__":
    key = jax.random.PRNGKey(0)
    B, D_in, D_out, budget = 16, 128, 256, 4

    k_x, k_w, k_b, k_r = jax.random.split(key, 4)
    x = jax.random.normal(k_x, (B, D_in), dtype=jnp.float32)
    # Deterministic synthetic expert parameters (one Linear per expert).
    w_stack = 0.1 * jax.random.normal(k_w, (budget, D_in, D_out), dtype=jnp.float32)
    b_stack = 0.1 * jax.random.normal(k_b, (budget, D_out), dtype=jnp.float32)
    # Routing assignment (self.module_indices in the PyTorch module).
    module_indices = jax.random.randint(k_r, (B,), 0, budget, dtype=jnp.int32)

    # Pure-JAX reference == torch.cat of per-sample expert outputs.
    ref = (jnp.einsum("bi,bio->bo", x, w_stack[module_indices],
                      precision=jax.lax.Precision.HIGHEST)
           + b_stack[module_indices])

    # f32 path, tm=128 default, auto tn (=256 -> single N tile).
    out = make_moe_forward(x, module_indices, w_stack, b_stack)
    jax.block_until_ready(out)
    assert out.shape == (B, D_out)
    assert jnp.allclose(out, ref, atol=2e-3, rtol=2e-3), \
        float(jnp.max(jnp.abs(out - ref)))

    # bf16 operands with f32 accumulation (v6e/v7x path): experts pre-stored in
    # bf16 (no per-call cast), N-tiled weights (tn=128 -> 2 N tiles).
    w_bf16 = w_stack.astype(jnp.bfloat16)
    out_bf16 = make_moe_forward(x, module_indices, w_bf16, b_stack, tn=128)
    jax.block_until_ready(out_bf16)
    assert out_bf16.shape == (B, D_out)
    assert jnp.allclose(out_bf16, ref, atol=1e-1, rtol=1e-1)

    print("KERNEL_OK")
</pallas_src>

<mosaic_0001>
module attributes {stable_mosaic.version = 11 : i64} {
  func.func @moe_kernel(%arg0: i32, %arg1: i32, %arg2: memref<5xi32, #tpu.memory_space<smem>>, %arg3: memref<5xi32, #tpu.memory_space<smem>>, %arg4: memref<128x128xf32, #tpu.memory_space<vmem>>, %arg5: memref<1x128x256xf32, #tpu.memory_space<vmem>>, %arg6: memref<1x1x256xf32, #tpu.memory_space<vmem>>, %arg7: memref<128x256xf32, #tpu.memory_space<vmem>>) attributes {dimension_semantics = [#tpu.dimension_semantics<parallel>, #tpu.dimension_semantics<parallel>], iteration_bounds = array<i64: 1, 5>, scalar_prefetch = 2 : i64, scratch_operands = 0 : i64, tpu.core_type = #tpu.core_type<tc>, window_params = [{transform_indices = @transform_0, window_bounds = array<i64: 128, 128>}, {transform_indices = @transform_1, window_bounds = array<i64: 1, 128, 256>}, {transform_indices = @transform_2, window_bounds = array<i64: 1, 1, 256>}, {transform_indices = @transform_3, window_bounds = array<i64: 128, 256>}]} {
    %0 = arith.index_cast %arg1 : i32 to index
    %1 = memref.load %arg3[%0] : memref<5xi32, #tpu.memory_space<smem>>
    %c0_i32 = arith.constant 0 : i32
    %2 = arith.cmpi ne, %1, %c0_i32 : i32
    %3 = arith.extui %2 : i1 to i32
    %c0_i32_0 = arith.constant 0 : i32
    %4 = arith.cmpi ne, %3, %c0_i32_0 : i32
    scf.if %4 {
      %c0 = arith.constant 0 : index
      %c0_1 = arith.constant 0 : index
      %5 = vector.load %arg4[%c0, %c0_1] : memref<128x128xf32, #tpu.memory_space<vmem>>, vector<128x128xf32>
      %c0_2 = arith.constant 0 : index
      %c0_3 = arith.constant 0 : index
      %c0_4 = arith.constant 0 : index
      %6 = vector.load %arg5[%c0_2, %c0_3, %c0_4] : memref<1x128x256xf32, #tpu.memory_space<vmem>>, vector<1x128x256xf32>
      %7 = vector.shape_cast %6 : vector<1x128x256xf32> to vector<128x256xf32>
      %cst = arith.constant dense<0.000000e+00> : vector<128x256xf32>
      %8 = tpu.matmul %5, %7, %cst {dimension_numbers = #tpu.dot_dimension_numbers<[1], [0], [0], [1], [0, 0, 1, 1], [], []>} : vector<128x128xf32>, vector<128x256xf32>, vector<128x256xf32> -> vector<128x256xf32>
      %c0_5 = arith.constant 0 : index
      %c0_6 = arith.constant 0 : index
      %c0_7 = arith.constant 0 : index
      %9 = vector.load %arg6[%c0_5, %c0_6, %c0_7] : memref<1x1x256xf32, #tpu.memory_space<vmem>>, vector<1x1x256xf32>
      %10 = vector.shape_cast %9 : vector<1x1x256xf32> to vector<1x256xf32>
      %11 = vector.broadcast %10 : vector<1x256xf32> to vector<128x256xf32>
      %12 = arith.addf %8, %11 : vector<128x256xf32>
      %c0_8 = arith.constant 0 : index
      %c0_9 = arith.constant 0 : index
      %13 = vector.load %arg7[%c0_8, %c0_9] : memref<128x256xf32, #tpu.memory_space<vmem>>, vector<128x256xf32>
      tpu.vector_store %arg7[%c0_8, %c0_9], %12 {strides = array<i32>} : memref<128x256xf32, #tpu.memory_space<vmem>>, vector<128x256xf32>,
    } else {
    }
    return
  }
  func.func @transform_0(%arg0: i32, %arg1: i32, %arg2: memref<5xi32, #tpu.memory_space<smem>>, %arg3: memref<5xi32, #tpu.memory_space<smem>>) -> (i32, i32) {
    %c0_i32 = arith.constant 0 : i32
    %c0_i32_0 = arith.constant 0 : i32
    return %arg1, %c0_i32 : i32, i32
  }
  func.func @transform_1(%arg0: i32, %arg1: i32, %arg2: memref<5xi32, #tpu.memory_space<smem>>, %arg3: memref<5xi32, #tpu.memory_space<smem>>) -> (i32, i32, i32) {
    %0 = arith.index_cast %arg1 : i32 to index
    %1 = memref.load %arg2[%0] : memref<5xi32, #tpu.memory_space<smem>>
    %c0_i32 = arith.constant 0 : i32
    %c0_i32_0 = arith.constant 0 : i32
    return %1, %c0_i32, %arg0 : i32, i32, i32
  }
  func.func @transform_2(%arg0: i32, %arg1: i32, %arg2: memref<5xi32, #tpu.memory_space<smem>>, %arg3: memref<5xi32, #tpu.memory_space<smem>>) -> (i32, i32, i32) {
    %0 = arith.index_cast %arg1 : i32 to index
    %1 = memref.load %arg2[%0] : memref<5xi32, #tpu.memory_space<smem>>
    %c0_i32 = arith.constant 0 : i32
    %c0_i32_0 = arith.constant 0 : i32
    return %1, %c0_i32, %arg0 : i32, i32, i32
  }
  func.func @transform_3(%arg0: i32, %arg1: i32, %arg2: memref<5xi32, #tpu.memory_space<smem>>, %arg3: memref<5xi32, #tpu.memory_space<smem>>) -> (i32, i32) {
    %c0_i32 = arith.constant 0 : i32
    return %arg1, %arg0 : i32, i32
  }
}

</mosaic_0001>

<llo_original>
// kernel: tpu_custom_call.1
$region0: #{tpu_custom_call.1}
  #allocation0 [shape = 'u32[]', space=smem, size = 0x4, offset = 0x4, fixed_abs, tag = 'smem constant byte address 0x4 - core index']
  #allocation1 [shape = 'u32[72,128]{1,0:T(1,128)}', space=vmem, size = 0x9000, scoped, tag = 'internal scratch']
  #allocation2 [shape = 's32[1]{0}', space=sflag, size = 0x4, scoped, tag = 'scoped memory for tpu_custom_call.1']
  #allocation3 [shape = 'u8[512]{0}', space=smem, size = 0x200, scoped, tag = 'prefetched SMEM operand 0']
  #allocation4 [shape = 'u8[512]{0}', space=smem, size = 0x200, scoped, tag = 'prefetched SMEM operand 1']
  %s0 = inlined_call_operand.hbm [shape: s32[5], index: 0, kind: input, shape index: {}]
  %s1 = inlined_call_operand.hbm [shape: s32[5], index: 1, kind: input, shape index: {}]
  %s2 = inlined_call_operand.hbm [shape: f32[640,128], index: 2, kind: input, shape index: {}]
  %s3 = inlined_call_operand.hbm [shape: f32[4,128,256], index: 3, kind: input, shape index: {}]
  %s4 = inlined_call_operand.hbm [shape: f32[4,1,256], index: 4, kind: input, shape index: {}]
  %s5 = inlined_call_operand.hbm [shape: f32[640,256], index: 5, kind: output, shape index: {}]
  %s6 = sld [smem:[#allocation0]]
  $region61: #{tpu_custom_call.1} parent=0
    _
  %s8 = ssub.s32 1, %s6
  %s9 = scalar_select 0, %s8, %s6
  %s11 = sshll.u32 %s0, 4
  %s12 = int_to_ptr.hbm [resolvable:$true] %s11
  %14 = dma.hbm_to_smem %s12, 16, [#allocation3], [#allocation2]
  %s16 = sshll.u32 %s1, 4
  %s17 = int_to_ptr.hbm [resolvable:$true] %s16
  %19 = dma.hbm_to_smem %s17, 16, [#allocation4], [#allocation2]
  %21 = dma.done [#allocation2], 32
  %22 = sfence
  $region1: #{tpu_custom_call.1} parent=0
    #allocation5 [shape = 'u8[131072]{0}', space=vmem, size = 0x20000, scoped, tag = 'input window, operand 2']
    #allocation6 [shape = 's32[2]{0}', space=sflag, size = 0x8, scoped, tag = 'scoped memory for tpu_custom_call.1']
    #allocation7 [shape = 's32[2]{0}', space=sflag, size = 0x8, scoped, tag = 'scoped memory for tpu_custom_call.1']
    #allocation8 [shape = 'u8[262144]{0}', space=vmem, size = 0x40000, scoped, tag = 'input window, operand 3']
    #allocation9 [shape = 's32[2]{0}', space=sflag, size = 0x8, scoped, tag = 'scoped memory for tpu_custom_call.1']
    #allocation10 [shape = 'u8[2048]{0}', space=vmem, size = 0x800, scoped, tag = 'input window, operand 4']
    #allocation11 [shape = 'u8[262144]{0}', space=vmem, size = 0x40000, scoped, tag = 'output window, operand 0']
    %23 = vsyncpa [#allocation6], 0
    %s24 = scalar_lea.sflag [#allocation6], 1
    %25 = vsyncpa %s24, 0
    %26 = vsyncpa [#allocation9], 0
    %s27 = scalar_lea.sflag [#allocation9], 1
    %28 = vsyncpa %s27, 0
    %29 = vsyncpa [#allocation7], 0
    %s30 = scalar_lea.sflag [#allocation7], 1
    %31 = vsyncpa %s30, 0
    loop: start=0, step=1, limit=7
    $region2: #{tpu_custom_call.1} parent=1 // loop_pre_header
      _
    $region3: #{tpu_custom_call.1} parent=1 // loop_header
      %s33 = sphi 0, %s37
      %p34 = scmp.ge.s32.totalorder %s33, 7
      %s40 = sphi 0, %s52
      %s41 = sphi 0, %s48
      %s42 = sphi 0, %s40
      %s43 = sphi 0, %s41
      %s44 = sphi 0, %s42
      %s45 = sphi 0, %s43
      %s55 = sphi 0, %s57
      %s58 = sphi 0, %s55
      %s59 = sphi 0, %s58
      %s75 = sphi 0, %s59
      %s85 = sphi 0, %s87
      %s88 = sphi 0, %s85
      %s89 = sphi 0, %s88
      %s105 = sphi 0, %s89
      %s115 = sphi 0, %s117
      %s118 = sphi 0, %s115
      %s119 = sphi 0, %s118
      %s135 = sphi 0, %s119
      %s143 = sphi 0, %s145
      %s146 = sphi 0, %s143
      %s147 = sphi 0, %s146
      %s163 = sphi 0, %s147
    $region4: #{tpu_custom_call.1} parent=1 // loop_header_branch
      %36 = sbr.rel (%p34) target = $region8
    $region5: #{tpu_custom_call.1} parent=1 // loop_body
      %s38 = ssub.s32 %s33, 1
      %s39 = ssub.s32 %s33, 2
      %s46 = sadd.s32 1, %s41
      %p47 = scmp.ge.s32.totalorder %s46, 5
      %s48 = scalar_select %p47, 0, %s46
      %s49 = sadd.s32 1, %s40
      %s50 = scalar_select %p47, %s49, %s40
      %p51 = scmp.ge.s32.totalorder %s50, 1
      %s52 = scalar_select %p51, 0, %s50
      %s53 = ssub.s32 %s41, %s48
      %p54 = scmp.eq.s32.totalorder %s53, 0
      %s56 = sadd.s32 %s55, 1
      %s57 = scalar_select %p54, %s55, %s56
      %p60 = pneg %p54
      %p61 = scmp.eq.s32.totalorder %s33, 4
      %p62 = por %p60, %p61
      %p63 = scmp.ne.s32.totalorder %s55, %s58
      %p64 = scmp.eq.s32.totalorder %s33, 0
      %p65 = por %p63, %p64
      %p66 = scmp.ne.s32.totalorder %s55, %s58
      %p67 = scmp.eq.s32.totalorder %s38, 4
      %p68 = por %p66, %p67
      %p69 = scmp.ne.s32.totalorder %s58, %s59
      %p70 = scmp.eq.s32.totalorder %s38, 0
      %p71 = por %p69, %p70
      %p72 = scmp.ne.s32.totalorder %s58, %s59
      %p73 = scmp.eq.s32.totalorder %s39, 4
      %p74 = por %p72, %p73
      %p76 = scmp.ne.s32.totalorder %s59, %s75
      %p77 = scmp.eq.s32.totalorder %s39, 0
      %p78 = por %p76, %p77
      %s79 = sld [smem:[#allocation3 + %s41]]
      %s80 = sld [smem:[#allocation3 + %s48]]
      %s81 = ssub.s32 %s79, %s80
      %s82 = ssub.s32 %s40, %s52
      %s83 = sor.u32 %s81, %s82
      %p84 = scmp.eq.s32.totalorder %s83, 0
      %s86 = sadd.s32 %s85, 1
      %s87 = scalar_select %p84, %s85, %s86
      %p90 = pneg %p84
      %p91 = scmp.eq.s32.totalorder %s33, 4
      %p92 = por %p90, %p91
      %p93 = scmp.ne.s32.totalorder %s85, %s88
      %p94 = scmp.eq.s32.totalorder %s33, 0
      %p95 = por %p93, %p94
      %p96 = scmp.ne.s32.totalorder %s85, %s88
      %p97 = scmp.eq.s32.totalorder %s38, 4
      %p98 = por %p96, %p97
      %p99 = scmp.ne.s32.totalorder %s88, %s89
      %p100 = scmp.eq.s32.totalorder %s38, 0
      %p101 = por %p99, %p100
      %p102 = scmp.ne.s32.totalorder %s88, %s89
      %p103 = scmp.eq.s32.totalorder %s39, 4
      %p104 = por %p102, %p103
      %p106 = scmp.ne.s32.totalorder %s89, %s105
      %p107 = scmp.eq.s32.totalorder %s39, 0
      %p108 = por %p106, %p107
      %s109 = sld [smem:[#allocation3 + %s41]]
      %s110 = sld [smem:[#allocation3 + %s48]]
      %s111 = ssub.s32 %s109, %s110
      %s112 = ssub.s32 %s40, %s52
      %s113 = sor.u32 %s111, %s112
      %p114 = scmp.eq.s32.totalorder %s113, 0
      %s116 = sadd.s32 %s115, 1
      %s117 = scalar_select %p114, %s115, %s116
      %p120 = pneg %p114
      %p121 = scmp.eq.s32.totalorder %s33, 4
      %p122 = por %p120, %p121
      %p123 = scmp.ne.s32.totalorder %s115, %s118
      %p124 = scmp.eq.s32.totalorder %s33, 0
      %p125 = por %p123, %p124
      %p126 = scmp.ne.s32.totalorder %s115, %s118
      %p127 = scmp.eq.s32.totalorder %s38, 4
      %p128 = por %p126, %p127
      %p129 = scmp.ne.s32.totalorder %s118, %s119
      %p130 = scmp.eq.s32.totalorder %s38, 0
      %p131 = por %p129, %p130
      %p132 = scmp.ne.s32.totalorder %s118, %s119
      %p133 = scmp.eq.s32.totalorder %s39, 4
      %p134 = por %p132, %p133
      %p136 = scmp.ne.s32.totalorder %s119, %s135
      %p137 = scmp.eq.s32.totalorder %s39, 0
      %p138 = por %p136, %p137
      %s139 = ssub.s32 %s41, %s48
      %s140 = ssub.s32 %s40, %s52
      %s141 = sor.u32 %s139, %s140
      %p142 = scmp.eq.s32.totalorder %s141, 0
      %s144 = sadd.s32 %s143, 1
      %s145 = scalar_select %p142, %s143, %s144
      %p148 = pneg %p142
      %p149 = scmp.eq.s32.totalorder %s33, 4
      %p150 = por %p148, %p149
      %p151 = scmp.ne.s32.totalorder %s143, %s146
      %p152 = scmp.eq.s32.totalorder %s33, 0
      %p153 = por %p151, %p152
      %p154 = scmp.ne.s32.totalorder %s143, %s146
      %p155 = scmp.eq.s32.totalorder %s38, 4
      %p156 = por %p154, %p155
      %p157 = scmp.ne.s32.totalorder %s146, %s147
      %p158 = scmp.eq.s32.totalorder %s38, 0
      %p159 = por %p157, %p158
      %p160 = scmp.ne.s32.totalorder %s146, %s147
      %p161 = scmp.eq.s32.totalorder %s39, 4
      %p162 = por %p160, %p161
      %p164 = scmp.ne.s32.totalorder %s147, %s163
      %p165 = scmp.eq.s32.totalorder %s39, 0
      %p166 = por %p164, %p165
      %p167 = scmp.le.s32.totalorder 1, %s33
      %p168 = scmp.lt.s32.totalorder %s33, 6
      %p169 = pnand %p167, %p168
      %p170 = pneg %p169
      // Predicated region
      $region9: #{tpu_custom_call.1} parent=5 // pred_check
        _
      $region10: #{tpu_custom_call.1} parent=5 // pred_check_branch
        %172 = sbr.rel (%p169) target = $region12
      $region11: #{tpu_custom_call.1} parent=5 // pred_region
        %s173 = ssub.s32 %s33, 1
      $region12: #{tpu_custom_call.1} parent=5 // pred_fallthru
        _
      %p174 = scmp.lt.s32.totalorder %s33, 5
      // Predicated region
      $region13: #{tpu_custom_call.1} parent=5 // pred_check
        %p175 = pneg %p174
      $region14: #{tpu_custom_call.1} parent=5 // pred_check_branch
        %177 = sbr.rel (%p175) target = $region16
      $region15: #{tpu_custom_call.1} parent=5 // pred_region
        // Predicated region
        $region17: #{tpu_custom_call.1} parent=15 // pred_check
          %p178 = pneg %p65
        $region18: #{tpu_custom_call.1} parent=15 // pred_check_branch
          %180 = sbr.rel (%p178) target = $region20
        $region19: #{tpu_custom_call.1} parent=15 // pred_region
          %s181 = sand.u32 %s55, 1
          %s182 = scalar_lea.sflag [#allocation6], %s181
          %s183 = sand.u32 %s55, 1
          %s184 = smul.addr %s183, 128
          %s185 = scalar_lea.vmem [#allocation5], %s184
          %s186 = smul.u32 16, %s41
          %188 = vsyncadd %s182, 0
          %s189 = smul.addr %s186, 8
          %s190 = scalar_lea.hbm %s2, %s189
          %s191 = sshll.u32 %s190, 4
          %s192 = int_to_ptr.hbm [resolvable:$true] %s191
          %s193 = sshll.u32 %s185, 4
          %s194 = int_to_ptr.vmem [resolvable:$true] %s193
          %199 = dma.hbm_to_vmem [thread:$0]  %s192, 2048, %s194, %s182, 128, 128, 8
        $region20: #{tpu_custom_call.1} parent=15 // pred_fallthru
          _
        // Predicated region
        $region21: #{tpu_custom_call.1} parent=15 // pred_check
          %p200 = pneg %p95
        $region22: #{tpu_custom_call.1} parent=15 // pred_check_branch
          %202 = sbr.rel (%p200) target = $region24
        $region23: #{tpu_custom_call.1} parent=15 // pred_region
          %s203 = sand.u32 %s33, 1
          %s204 = scalar_lea.sflag [#allocation9], %s203
          %s205 = sand.u32 %s85, 1
          %s206 = smul.addr %s205, 256
          %s207 = scalar_lea.vmem [#allocation8], %s206
          %s208 = sld [smem:[#allocation3 + %s41]]
          %s209 = smul.u32 2, %s40
          %211 = vsyncadd %s204, 0
          %s212 = smul.addr %s208, 32
          %s213 = sadd.s32 %s209, %s212
          %s214 = smul.addr %s213, 8
          %s215 = scalar_lea.hbm %s3, %s214
          %s216 = sshll.u32 %s215, 4
          %s217 = int_to_ptr.hbm [resolvable:$true] %s216
          %s218 = sshll.u32 %s207, 4
          %s219 = int_to_ptr.vmem [resolvable:$true] %s218
          %224 = dma.hbm_to_vmem [thread:$0]  %s217, 4096, %s219, %s204, 256, 256, 16
        $region24: #{tpu_custom_call.1} parent=15 // pred_fallthru
          _
        // Predicated region
        $region25: #{tpu_custom_call.1} parent=15 // pred_check
          %p225 = pneg %p125
        $region26: #{tpu_custom_call.1} parent=15 // pred_check_branch
          %227 = sbr.rel (%p225) target = $region28
        $region27: #{tpu_custom_call.1} parent=15 // pred_region
          %s228 = sand.u32 %s33, 1
          %s229 = scalar_lea.sflag [#allocation9], %s228
          %s230 = sand.u32 %s115, 1
          %s231 = smul.addr %s230, 2
          %s232 = scalar_lea.vmem [#allocation10], %s231
          %s233 = sld [smem:[#allocation3 + %s41]]
          %s234 = smul.u32 2, %s40
          %236 = vsyncadd %s229, 0
          %s237 = smul.addr %s233, 2
          %s238 = sadd.s32 %s234, %s237
          %s239 = scalar_lea.hbm %s4, %s238
          %s241 = sshll.u32 %s239, 4
          %s242 = int_to_ptr.hbm [resolvable:$true] %s241
          %s243 = sshll.u32 %s232, 4
          %s244 = int_to_ptr.vmem [resolvable:$true] %s243
          %246 = dma.hbm_to_vmem [thread:$0]  %s242, 32, %s244, %s229
        $region28: #{tpu_custom_call.1} parent=15 // pred_fallthru
          _
      $region16: #{tpu_custom_call.1} parent=5 // pred_fallthru
        _
      %p247 = scmp.le.s32.totalorder 1, %s33
      %p248 = scmp.lt.s32.totalorder %s33, 6
      %p249 = pnand %p247, %p248
      %p250 = pneg %p249
      // Predicated region
      $region29: #{tpu_custom_call.1} parent=5 // pred_check
        _
      $region30: #{tpu_custom_call.1} parent=5 // pred_check_branch
        %252 = sbr.rel (%p249) target = $region32
      $region31: #{tpu_custom_call.1} parent=5 // pred_region
        %s253 = ssub.s32 %s33, 1
        %s254 = sand.u32 %s58, 1
        %s255 = scalar_lea.sflag [#allocation6], %s254
        %s256 = sand.u32 %s58, 1
        %s257 = smul.addr %s256, 128
        %s258 = scalar_lea.vmem [#allocation5], %s257
        // Predicated region
        $region33: #{tpu_custom_call.1} parent=31 // pred_check
          %p259 = pneg %p71
        $region34: #{tpu_custom_call.1} parent=31 // pred_check_branch
          %261 = sbr.rel (%p259) target = $region36
        $region35: #{tpu_custom_call.1} parent=31 // pred_region
          %263 = dma.done %s255, 2048
        $region36: #{tpu_custom_call.1} parent=31 // pred_fallthru
          _
        %s264 = sand.u32 %s38, 1
        %s265 = scalar_lea.sflag [#allocation9], %s264
        %s266 = sand.u32 %s88, 1
        %s267 = smul.addr %s266, 256
        %s268 = scalar_lea.vmem [#allocation8], %s267
        // Predicated region
        $region37: #{tpu_custom_call.1} parent=31 // pred_check
          %p269 = pneg %p101
        $region38: #{tpu_custom_call.1} parent=31 // pred_check_branch
          %271 = sbr.rel (%p269) target = $region40
        $region39: #{tpu_custom_call.1} parent=31 // pred_region
          %273 = dma.done %s265, 4096
        $region40: #{tpu_custom_call.1} parent=31 // pred_fallthru
          _
        %s274 = sand.u32 %s38, 1
        %s275 = scalar_lea.sflag [#allocation9], %s274
        %s276 = sand.u32 %s118, 1
        %s277 = smul.addr %s276, 2
        %s278 = scalar_lea.vmem [#allocation10], %s277
        // Predicated region
        $region41: #{tpu_custom_call.1} parent=31 // pred_check
          %p279 = pneg %p131
        $region42: #{tpu_custom_call.1} parent=31 // pred_check_branch
          %281 = sbr.rel (%p279) target = $region44
        $region43: #{tpu_custom_call.1} parent=31 // pred_region
          %283 = dma.done %s275, 32
        $region44: #{tpu_custom_call.1} parent=31 // pred_fallthru
          _
        %s284 = sand.u32 %s58, 1
        %s285 = scalar_lea.sflag [#allocation6], %s284
        %s286 = sand.u32 %s58, 1
        %s287 = smul.addr %s286, 128
        %s288 = scalar_lea.vmem [#allocation5], %s287
        %p289 = pneg %p71
        %p290 = pneg %p68
        %s291 = sand.u32 %s38, 1
        %s292 = scalar_lea.sflag [#allocation9], %s291
        %s293 = sand.u32 %s88, 1
        %s294 = smul.addr %s293, 256
        %s295 = scalar_lea.vmem [#allocation8], %s294
        %p296 = pneg %p101
        %p297 = pneg %p98
        %s298 = sand.u32 %s38, 1
        %s299 = scalar_lea.sflag [#allocation9], %s298
        %s300 = sand.u32 %s118, 1
        %s301 = smul.addr %s300, 2
        %s302 = scalar_lea.vmem [#allocation10], %s301
        %p303 = pneg %p131
        %p304 = pneg %p128
        %p305 = pneg %p159
        %p306 = pneg %p156
        %s307 = sand.u32 %s146, 1
        %s308 = scalar_lea.sflag [#allocation7], %s307
        %s309 = sand.u32 %s146, 1
        %s310 = smul.addr %s309, 256
        %s311 = scalar_lea.vmem [#allocation11], %s310
        %s312 = smul.u32 16, %s43
        %s313 = sld [smem:[#allocation3 + %s43]]
        %s314 = smul.u32 2, %s42
        %s315 = sld [smem:[#allocation3 + %s43]]
        %s316 = smul.u32 2, %s42
        %s317 = smul.u32 16, %s43
        %s318 = smul.u32 2, %s42
        %s319 = sld [smem:[#allocation4 + %s43]]
        %p320 = scmp.ne.s32.totalorder %s319, 0
        // Predicated region
        $region45: #{tpu_custom_call.1} parent=31 // pred_check
          %p321 = pneg %p320
        $region46: #{tpu_custom_call.1} parent=31 // pred_check_branch
          %323 = sbr.rel (%p321) target = $region48
        $region47: #{tpu_custom_call.1} parent=31 // pred_region
          %v324 = vld [vmem:[%s258] sm:$0xff]
          %v325 = vld [vmem:[%s258 + $0x8] sm:$0xff]
          %v326 = vld [vmem:[%s258 + $0x10] sm:$0xff]
          %v327 = vld [vmem:[%s258 + $0x18] sm:$0xff]
          %v328 = vld [vmem:[%s258 + $0x20] sm:$0xff]
          %v329 = vld [vmem:[%s258 + $0x28] sm:$0xff]
          %v330 = vld [vmem:[%s258 + $0x30] sm:$0xff]
          %v331 = vld [vmem:[%s258 + $0x38] sm:$0xff]
          %v332 = vld [vmem:[%s258 + $0x40] sm:$0xff]
          %v333 = vld [vmem:[%s258 + $0x48] sm:$0xff]
          %v334 = vld [vmem:[%s258 + $0x50] sm:$0xff]
          %v335 = vld [vmem:[%s258 + $0x58] sm:$0xff]
          %v336 = vld [vmem:[%s258 + $0x60] sm:$0xff]
          %v337 = vld [vmem:[%s258 + $0x68] sm:$0xff]
          %v338 = vld [vmem:[%s258 + $0x70] sm:$0xff]
          %v339 = vld [vmem:[%s258 + $0x78] sm:$0xff]
          %v340 = vld [vmem:[%s268] sm:$0xff]
          %v341 = vld [vmem:[%s268 + $0x8] sm:$0xff]
          %v342 = vld [vmem:[%s268 + $0x10] sm:$0xff]
          %v343 = vld [vmem:[%s268 + $0x18] sm:$0xff]
          %v344 = vld [vmem:[%s268 + $0x20] sm:$0xff]
          %v345 = vld [vmem:[%s268 + $0x28] sm:$0xff]
          %v346 = vld [vmem:[%s268 + $0x30] sm:$0xff]
          %v347 = vld [vmem:[%s268 + $0x38] sm:$0xff]
          %v348 = vld [vmem:[%s268 + $0x40] sm:$0xff]
          %v349 = vld [vmem:[%s268 + $0x48] sm:$0xff]
          %v350 = vld [vmem:[%s268 + $0x50] sm:$0xff]
          %v351 = vld [vmem:[%s268 + $0x58] sm:$0xff]
          %v352 = vld [vmem:[%s268 + $0x60] sm:$0xff]
          %v353 = vld [vmem:[%s268 + $0x68] sm:$0xff]
          %v354 = vld [vmem:[%s268 + $0x70] sm:$0xff]
          %v355 = vld [vmem:[%s268 + $0x78] sm:$0xff]
          %v356 = vld [vmem:[%s268 + $0x80] sm:$0xff]
          %v357 = vld [vmem:[%s268 + $0x88] sm:$0xff]
          %v358 = vld [vmem:[%s268 + $0x90] sm:$0xff]
          %v359 = vld [vmem:[%s268 + $0x98] sm:$0xff]
          %v360 = vld [vmem:[%s268 + $0xa0] sm:$0xff]
          %v361 = vld [vmem:[%s268 + $0xa8] sm:$0xff]
          %v362 = vld [vmem:[%s268 + $0xb0] sm:$0xff]
          %v363 = vld [vmem:[%s268 + $0xb8] sm:$0xff]
          %v364 = vld [vmem:[%s268 + $0xc0] sm:$0xff]
          %v365 = vld [vmem:[%s268 + $0xc8] sm:$0xff]
          %v366 = vld [vmem:[%s268 + $0xd0] sm:$0xff]
          %v367 = vld [vmem:[%s268 + $0xd8] sm:$0xff]
          %v368 = vld [vmem:[%s268 + $0xe0] sm:$0xff]
          %v369 = vld [vmem:[%s268 + $0xe8] sm:$0xff]
          %v370 = vld [vmem:[%s268 + $0xf0] sm:$0xff]
          %v371 = vld [vmem:[%s268 + $0xf8] sm:$0xff]
          %v372 = vld [vmem:[%s278] sm:$0x3]
          %v374 = vperm.slane %v372, 0
          %v375 = vperm.slane %v372, 1
          %378 = vmatpush.msra.mxu0 %v370
          %379 = vmatpush.msra.mxu0 %v368
          %380 = vmatpush.msra.mxu0 %v366
          %381 = vmatpush.msra.mxu0 %v364
          %382 = vmatpush.msra.mxu0 %v362
          %383 = vmatpush.msra.mxu0 %v360
          %384 = vmatpush.msra.mxu0 %v358
          %385 = vmatpush.msra.mxu0 %v356
          %386 = vmatpush.msra.mxu0 %v354
          %387 = vmatpush.msra.mxu0 %v352
          %388 = vmatpush.msra.mxu0 %v350
          %389 = vmatpush.msra.mxu0 %v348
          %390 = vmatpush.msra.mxu0 %v346
          %391 = vmatpush.msra.mxu0 %v344
          %392 = vmatpush.msra.mxu0 %v342
          %393 = vmatpush.msra.mxu0 %v340
          %394 = vmatmul.f32.gmra.mxu0 %v324
          %v395 = vpop.f32.mrf.mxu0
          %v396 = vadd.f32 %v374, %v395
          %397 = vmatmul.f32.gmra.mxu0 %v325
          %v398 = vpop.f32.mrf.mxu0
          %v399 = vadd.f32 %v374, %v398
          %400 = vmatmul.f32.gmra.mxu0 %v326
          %v401 = vpop.f32.mrf.mxu0
          %v402 = vadd.f32 %v374, %v401
          %403 = vmatmul.f32.gmra.mxu0 %v327
          %v404 = vpop.f32.mrf.mxu0
          %v405 = vadd.f32 %v374, %v404
          %406 = vmatmul.f32.gmra.mxu0 %v328
          %v407 = vpop.f32.mrf.mxu0
          %v408 = vadd.f32 %v374, %v407
          %409 = vmatmul.f32.gmra.mxu0 %v329
          %v410 = vpop.f32.mrf.mxu0
          %v411 = vadd.f32 %v374, %v410
          %412 = vmatmul.f32.gmra.mxu0 %v330
          %v413 = vpop.f32.mrf.mxu0
          %v414 = vadd.f32 %v374, %v413
          %415 = vmatmul.f32.gmra.mxu0 %v331
          %v416 = vpop.f32.mrf.mxu0
          %v417 = vadd.f32 %v374, %v416
          %418 = vmatmul.f32.gmra.mxu0 %v332
          %v419 = vpop.f32.mrf.mxu0
          %v420 = vadd.f32 %v374, %v419
          %421 = vmatmul.f32.gmra.mxu0 %v333
          %v422 = vpop.f32.mrf.mxu0
          %v423 = vadd.f32 %v374, %v422
          %424 = vmatmul.f32.gmra.mxu0 %v334
          %v425 = vpop.f32.mrf.mxu0
          %v426 = vadd.f32 %v374, %v425
          %427 = vmatmul.f32.gmra.mxu0 %v335
          %v428 = vpop.f32.mrf.mxu0
          %v429 = vadd.f32 %v374, %v428
          %430 = vmatmul.f32.gmra.mxu0 %v336
          %v431 = vpop.f32.mrf.mxu0
          %v432 = vadd.f32 %v374, %v431
          %433 = vmatmul.f32.gmra.mxu0 %v337
          %v434 = vpop.f32.mrf.mxu0
          %v435 = vadd.f32 %v374, %v434
          %436 = vmatmul.f32.gmra.mxu0 %v338
          %v437 = vpop.f32.mrf.mxu0
          %v438 = vadd.f32 %v374, %v437
          %439 = vmatmul.f32.gmra.mxu0 %v339
          %v440 = vpop.f32.mrf.mxu0
          %v441 = vadd.f32 %v374, %v440
          %442 = vdwg.mxu0
          %443 = vmatpush.msra.mxu0 %v371
          %444 = vmatpush.msra.mxu0 %v369
          %445 = vmatpush.msra.mxu0 %v367
          %446 = vmatpush.msra.mxu0 %v365
          %447 = vmatpush.msra.mxu0 %v363
          %448 = vmatpush.msra.mxu0 %v361
          %449 = vmatpush.msra.mxu0 %v359
          %450 = vmatpush.msra.mxu0 %v357
          %451 = vmatpush.msra.mxu0 %v355
          %452 = vmatpush.msra.mxu0 %v353
          %453 = vmatpush.msra.mxu0 %v351
          %454 = vmatpush.msra.mxu0 %v349
          %455 = vmatpush.msra.mxu0 %v347
          %456 = vmatpush.msra.mxu0 %v345
          %457 = vmatpush.msra.mxu0 %v343
          %458 = vmatpush.msra.mxu0 %v341
          %459 = vmatmul.f32.gmra.mxu0 %v324
          %v460 = vpop.f32.mrf.mxu0
          %v461 = vadd.f32 %v375, %v460
          %462 = vmatmul.f32.gmra.mxu0 %v325
          %v463 = vpop.f32.mrf.mxu0
          %v464 = vadd.f32 %v375, %v463
          %465 = vmatmul.f32.gmra.mxu0 %v326
          %v466 = vpop.f32.mrf.mxu0
          %v467 = vadd.f32 %v375, %v466
          %468 = vmatmul.f32.gmra.mxu0 %v327
          %v469 = vpop.f32.mrf.mxu0
          %v470 = vadd.f32 %v375, %v469
          %471 = vmatmul.f32.gmra.mxu0 %v328
          %v472 = vpop.f32.mrf.mxu0
          %v473 = vadd.f32 %v375, %v472
          %474 = vmatmul.f32.gmra.mxu0 %v329
          %v475 = vpop.f32.mrf.mxu0
          %v476 = vadd.f32 %v375, %v475
          %477 = vmatmul.f32.gmra.mxu0 %v330
          %v478 = vpop.f32.mrf.mxu0
          %v479 = vadd.f32 %v375, %v478
          %480 = vmatmul.f32.gmra.mxu0 %v331
          %v481 = vpop.f32.mrf.mxu0
          %v482 = vadd.f32 %v375, %v481
          %483 = vmatmul.f32.gmra.mxu0 %v332
          %v484 = vpop.f32.mrf.mxu0
          %v485 = vadd.f32 %v375, %v484
          %486 = vmatmul.f32.gmra.mxu0 %v333
          %v487 = vpop.f32.mrf.mxu0
          %v488 = vadd.f32 %v375, %v487
          %489 = vmatmul.f32.gmra.mxu0 %v334
          %v490 = vpop.f32.mrf.mxu0
          %v491 = vadd.f32 %v375, %v490
          %492 = vmatmul.f32.gmra.mxu0 %v335
          %v493 = vpop.f32.mrf.mxu0
          %v494 = vadd.f32 %v375, %v493
          %495 = vmatmul.f32.gmra.mxu0 %v336
          %v496 = vpop.f32.mrf.mxu0
          %v497 = vadd.f32 %v375, %v496
          %498 = vmatmul.f32.gmra.mxu0 %v337
          %v499 = vpop.f32.mrf.mxu0
          %v500 = vadd.f32 %v375, %v499
          %501 = vmatmul.f32.gmra.mxu0 %v338
          %v502 = vpop.f32.mrf.mxu0
          %v503 = vadd.f32 %v375, %v502
          %504 = vmatmul.f32.gmra.mxu0 %v339
          %v505 = vpop.f32.mrf.mxu0
          %v506 = vadd.f32 %v375, %v505
          %507 = vdwg.mxu0
          %508 = vst [vmem:[%s311] sm:$0xff] %v396
          %509 = vst [vmem:[%s311 + $0x8] sm:$0xff] %v461
          %510 = vst [vmem:[%s311 + $0x10] sm:$0xff] %v399
          %511 = vst [vmem:[%s311 + $0x18] sm:$0xff] %v464
          %512 = vst [vmem:[%s311 + $0x20] sm:$0xff] %v402
          %513 = vst [vmem:[%s311 + $0x28] sm:$0xff] %v467
          %514 = vst [vmem:[%s311 + $0x30] sm:$0xff] %v405
          %515 = vst [vmem:[%s311 + $0x38] sm:$0xff] %v470
          %516 = vst [vmem:[%s311 + $0x40] sm:$0xff] %v408
          %517 = vst [vmem:[%s311 + $0x48] sm:$0xff] %v473
          %518 = vst [vmem:[%s311 + $0x50] sm:$0xff] %v411
          %519 = vst [vmem:[%s311 + $0x58] sm:$0xff] %v476
          %520 = vst [vmem:[%s311 + $0x60] sm:$0xff] %v414
          %521 = vst [vmem:[%s311 + $0x68] sm:$0xff] %v479
          %522 = vst [vmem:[%s311 + $0x70] sm:$0xff] %v417
          %523 = vst [vmem:[%s311 + $0x78] sm:$0xff] %v482
          %524 = vst [vmem:[%s311 + $0x80] sm:$0xff] %v420
          %525 = vst [vmem:[%s311 + $0x88] sm:$0xff] %v485
          %526 = vst [vmem:[%s311 + $0x90] sm:$0xff] %v423
          %527 = vst [vmem:[%s311 + $0x98] sm:$0xff] %v488
          %528 = vst [vmem:[%s311 + $0xa0] sm:$0xff] %v426
          %529 = vst [vmem:[%s311 + $0xa8] sm:$0xff] %v491
          %530 = vst [vmem:[%s311 + $0xb0] sm:$0xff] %v429
          %531 = vst [vmem:[%s311 + $0xb8] sm:$0xff] %v494
          %532 = vst [vmem:[%s311 + $0xc0] sm:$0xff] %v432
          %533 = vst [vmem:[%s311 + $0xc8] sm:$0xff] %v497
          %534 = vst [vmem:[%s311 + $0xd0] sm:$0xff] %v435
          %535 = vst [vmem:[%s311 + $0xd8] sm:$0xff] %v500
          %536 = vst [vmem:[%s311 + $0xe0] sm:$0xff] %v438
          %537 = vst [vmem:[%s311 + $0xe8] sm:$0xff] %v503
          %538 = vst [vmem:[%s311 + $0xf0] sm:$0xff] %v441
          %539 = vst [vmem:[%s311 + $0xf8] sm:$0xff] %v506
        $region48: #{tpu_custom_call.1} parent=31 // pred_fallthru
          _
        %s540 = sand.u32 %s146, 1
        %s541 = scalar_lea.sflag [#allocation7], %s540
        %s542 = sand.u32 %s146, 1
        %s543 = smul.addr %s542, 256
        %s544 = scalar_lea.vmem [#allocation11], %s543
        // Predicated region
        $region49: #{tpu_custom_call.1} parent=31 // pred_check
          %p545 = pneg %p156
        $region50: #{tpu_custom_call.1} parent=31 // pred_check_branch
          %547 = sbr.rel (%p545) target = $region52
        $region51: #{tpu_custom_call.1} parent=31 // pred_region
          %s548 = smul.u32 16, %s43
          %s549 = smul.u32 2, %s42
          %551 = vsyncadd %s541, 0
          %s552 = smul.addr %s548, 2
          %s553 = sadd.s32 %s549, %s552
          %s554 = smul.addr %s553, 8
          %s555 = scalar_lea.hbm %s5, %s554
          %s556 = sshll.u32 %s544, 4
          %s557 = int_to_ptr.vmem [resolvable:$true] %s556
          %s558 = sshll.u32 %s555, 4
          %s559 = int_to_ptr.hbm [resolvable:$true] %s558
          %564 = dma.vmem_to_hbm [thread:$0]  %s557, 4096, %s559, %s541, 256, 256, 16
        $region52: #{tpu_custom_call.1} parent=31 // pred_fallthru
          _
      $region32: #{tpu_custom_call.1} parent=5 // pred_fallthru
        _
      %p565 = scmp.le.s32.totalorder 2, %s33
      // Predicated region
      $region53: #{tpu_custom_call.1} parent=5 // pred_check
        %p566 = pneg %p565
      $region54: #{tpu_custom_call.1} parent=5 // pred_check_branch
        %568 = sbr.rel (%p566) target = $region56
      $region55: #{tpu_custom_call.1} parent=5 // pred_region
        %s569 = ssub.s32 %s33, 2
        // Predicated region
        $region57: #{tpu_custom_call.1} parent=55 // pred_check
          %p570 = pneg %p162
        $region58: #{tpu_custom_call.1} parent=55 // pred_check_branch
          %572 = sbr.rel (%p570) target = $region60
        $region59: #{tpu_custom_call.1} parent=55 // pred_region
          %s573 = sand.u32 %s147, 1
          %s574 = scalar_lea.sflag [#allocation7], %s573
          %s575 = sand.u32 %s147, 1
          %s576 = smul.addr %s575, 256
          %s577 = scalar_lea.vmem [#allocation11], %s576
          %579 = dma.done %s574, 4096
        $region60: #{tpu_custom_call.1} parent=55 // pred_fallthru
          _
      $region56: #{tpu_custom_call.1} parent=5 // pred_fallthru
        _
    $region6: #{tpu_custom_call.1} parent=1 // loop_footer
      %s37 = sadd.s32 1, %s33
    $region7: #{tpu_custom_call.1} parent=1 // loop_footer_branch
      %32 = sbr.rel target = $region3
    $region8: #{tpu_custom_call.1} parent=1 // loop_exit
      _
    %580 = vsyncpa [#allocation6], 1
    %s581 = scalar_lea.sflag [#allocation6], 1
    %582 = vsyncpa %s581, 1
    %583 = vsyncpa [#allocation9], 1
    %s584 = scalar_lea.sflag [#allocation9], 1
    %585 = vsyncpa %s584, 1
    %586 = vsyncpa [#allocation7], 1
    %s587 = scalar_lea.sflag [#allocation7], 1
    %588 = vsyncpa %s587, 1

</llo_original>
